<compile_context>
chip_gen: v6e
topology: v6e:2x2x1
jax: 0.10.0
libtpu: 0.0.40
codegen_flags: <defaults>
</compile_context>

<pallas_src>
import jax
import jax.numpy as jnp
from jax.experimental import pallas as pl
from jax.experimental.pallas import tpu as pltpu


def _round_up(x, m):
    return (x + m - 1) // m * m


def _largest_chunk(total, cap):
    """Largest of {2048,1024,512,256,128} that divides `total` and is <= cap."""
    for c in (2048, 1024, 512, 256, 128):
        if c <= cap and total % c == 0:
            return c
    return total


def _vmem_budget_bytes(frac=0.8):
    """Per-core VMEM budget with ~20% headroom; conservative fallback if unknown."""
    cap = 64 * 1024 * 1024
    try:
        info = pltpu.get_tpu_info()
        cap = int(getattr(info, "vmem_capacity_bytes", cap))
    except Exception:
        pass
    return max(16 * 1024 * 1024, int(cap * frac))


# ----------------------------- kernels --------------------------------------

def _make_resident_kernel(n_chunks, tff):
    """Weight-stationary FFN; grid over M tiles only.

    d_ff is chunked *inside* the kernel (static tff-wide slices of the resident
    weights) so the live f32 hidden activation is bounded at (tm, tff) instead
    of (tm, d_ff).  Partial products accumulate into a (tm, d_model) f32 scratch.
    """

    def kernel(x_ref, w1_ref, b1_ref, w2_ref, b2_ref, o_ref, acc_ref):
        x = x_ref[...]
        acc_ref[...] = jnp.zeros_like(acc_ref)
        # Static Python loop -> fully unrolled, static ref slices (free views),
        # and the acc_ref RMW bounds every iteration's live values.
        for c in range(n_chunks):
            lo = c * tff
            h = jnp.dot(x, w1_ref[:, lo:lo + tff],
                        preferred_element_type=jnp.float32)
            h = jnp.maximum(h + b1_ref[:, lo:lo + tff], 0.0)   # bias+ReLU in f32
            acc_ref[...] += jnp.dot(h.astype(w2_ref.dtype),
                                    w2_ref[lo:lo + tff, :],
                                    preferred_element_type=jnp.float32)
        o_ref[...] = (acc_ref[...] + b2_ref[...]).astype(o_ref.dtype)

    return kernel


def ffn_kernel_ff_tiled(x_ref, w1_ref, b1_ref, w2_ref, b2_ref, o_ref, acc_ref):
    """d_ff-grid-tiled FFN: grid=(M_tiles, F_tiles); accumulate over d_ff in VMEM."""
    f = pl.program_id(1)

    @pl.when(f == 0)
    def _():
        acc_ref[...] = jnp.zeros_like(acc_ref)

    # ReLU is elementwise over d_ff, so per-d_ff-slice processing is exact.
    h = jnp.dot(x_ref[...], w1_ref[...], preferred_element_type=jnp.float32)
    h = jnp.maximum(h + b1_ref[...], 0.0)
    acc_ref[...] += jnp.dot(h.astype(w2_ref.dtype), w2_ref[...],
                            preferred_element_type=jnp.float32)

    @pl.when(f == pl.num_programs(1) - 1)
    def _():
        o_ref[...] = (acc_ref[...] + b2_ref[...]).astype(o_ref.dtype)


# ----------------------------- weight packing --------------------------------

def pack_ffn_params(w1, b1, w2, b2, *, compute_dtype=jnp.bfloat16):
    """Cast + lane-pad the FFN weights once (hoisted out of the forward path).

    w1: (d_model, d_ff)   b1: (d_ff,)       (nn.Linear weights pre-transposed)
    w2: (d_ff, d_model)   b2: (d_model,)
    """
    D, F = w1.shape
    D_pad = _round_up(D, 128)
    F_pad = _round_up(F, 128)
    w1p = jnp.pad(w1.astype(compute_dtype), ((0, D_pad - D), (0, F_pad - F)))
    w2p = jnp.pad(w2.astype(compute_dtype), ((0, F_pad - F), (0, D_pad - D)))
    b1p = jnp.pad(b1.reshape(1, -1).astype(jnp.float32), ((0, 0), (0, F_pad - F)))
    b2p = jnp.pad(b2.reshape(1, -1).astype(jnp.float32), ((0, 0), (0, D_pad - D)))
    return dict(w1=w1p, b1=b1p, w2=w2p, b2=b2p,
                d_model=D, d_ff=F, compute_dtype=compute_dtype)


# ----------------------------- wrapper ---------------------------------------

def positionwise_ffn_packed(x, packed, *, tile_m=512, tile_ff=None,
                            inner_chunk=1024):
    """y = relu(x @ w1 + b1) @ w2 + b2, with pre-packed weights.

    tile_ff=None: auto-select resident vs. d_ff-grid-tiled path from the VMEM
    budget of the current TPU generation.  Pass tile_ff to force the grid-tiled
    path with that d_ff tile width.
    """
    B, S, D = x.shape
    assert D == packed["d_model"], "x feature dim != packed d_model"
    compute_dtype = packed["compute_dtype"]
    w1p, b1p, w2p, b2p = packed["w1"], packed["b1"], packed["w2"], packed["b2"]
    D_pad, F_pad = w1p.shape
    out_dtype = x.dtype

    cbytes = jnp.dtype(compute_dtype).itemsize
    obytes = jnp.dtype(out_dtype).itemsize
    sub = 16 if cbytes < 4 else 8          # natural sublane tile for the dtype

    M = B * S
    tm = max(sub, min(_round_up(tile_m, sub), _round_up(M, sub)))

    budget = _vmem_budget_bytes()
    vmem_limit = budget

    # --- path selection / tile sizing against the VMEM budget ---------------
    tff_inner = _largest_chunk(F_pad, min(max(inner_chunk, 128), F_pad))

    def resident_vmem(tm_):
        return (2 * D_pad * F_pad * cbytes              # w1 + w2 (single-buffered)
                + 2 * tm_ * D_pad * (cbytes + obytes)   # x / out double-buffered
                + tm_ * D_pad * 4                       # f32 accumulator
                + 2 * tm_ * tff_inner * 4)              # live f32 hidden chunk

    use_tiled = tile_ff is not None
    if not use_tiled and resident_vmem(tm) > budget:
        while tm > 256 and resident_vmem(tm) > budget:
            tm = _round_up(tm // 2, sub)
        use_tiled = resident_vmem(tm) > budget

    if use_tiled:
        req = tile_ff if tile_ff is not None else 512
        req = min(max(_round_up(req, 256), 256), F_pad)   # 256-aligned, >=512 default
        tff = _largest_chunk(F_pad, req)

        def tiled_vmem(tm_):
            return (2 * 2 * D_pad * tff * cbytes             # w1/w2 tiles, 2-buffered
                    + 2 * tm_ * D_pad * (cbytes + obytes)    # x / out
                    + tm_ * D_pad * 4                        # f32 accumulator
                    + 2 * tm_ * tff * 4)                     # live f32 hidden

        while tm > 2 * sub and tiled_vmem(tm) > budget:
            tm = _round_up(tm // 2, sub)

    M_pad = _round_up(M, tm)
    m_tiles = M_pad // tm
    x2d = jnp.pad(x.reshape(M, D).astype(compute_dtype),
                  ((0, M_pad - M), (0, D_pad - D)))

    flops = 4 * M_pad * D_pad * F_pad
    x_bytes = M_pad * D_pad * cbytes
    o_bytes = M_pad * D_pad * obytes
    w_bytes = 2 * D_pad * F_pad * cbytes + (F_pad + D_pad) * 4

    if not use_tiled:
        cost = pl.CostEstimate(flops=flops, transcendentals=0,
                               bytes_accessed=x_bytes + o_bytes + w_bytes)

        def run_resident(single_buffer_weights):
            def wspec(shape):
                if single_buffer_weights:
                    return pl.BlockSpec(shape, lambda i: (0, 0),
                                        pipeline_mode=pl.Buffered(1))
                return pl.BlockSpec(shape, lambda i: (0, 0))

            kernel = _make_resident_kernel(F_pad // tff_inner, tff_inner)
            return pl.pallas_call(
                kernel,
                out_shape=jax.ShapeDtypeStruct((M_pad, D_pad), out_dtype),
                grid_spec=pltpu.PrefetchScalarGridSpec(
                    num_scalar_prefetch=0,
                    grid=(m_tiles,),
                    in_specs=[
                        pl.BlockSpec((tm, D_pad), lambda i: (i, 0)),
                        wspec((D_pad, F_pad)),
                        wspec((1, F_pad)),
                        wspec((F_pad, D_pad)),
                        wspec((1, D_pad)),
                    ],
                    out_specs=pl.BlockSpec((tm, D_pad), lambda i: (i, 0)),
                    scratch_shapes=[pltpu.VMEM((tm, D_pad), jnp.float32)],
                ),
                compiler_params=pltpu.CompilerParams(
                    dimension_semantics=("parallel",),
                    vmem_limit_bytes=vmem_limit),
                cost_estimate=cost,
            )(x2d, w1p, b1p, w2p, b2p)

        try:
            out2d = run_resident(True)      # single-buffered resident weights
        except Exception:
            out2d = run_resident(False)     # fallback: default double-buffering
    else:
        f_tiles = F_pad // tff
        cost = pl.CostEstimate(
            flops=flops, transcendentals=0,
            bytes_accessed=x_bytes + o_bytes + m_tiles * w_bytes)

        out2d = pl.pallas_call(
            ffn_kernel_ff_tiled,
            out_shape=jax.ShapeDtypeStruct((M_pad, D_pad), out_dtype),
            grid_spec=pltpu.PrefetchScalarGridSpec(
                num_scalar_prefetch=0,
                grid=(m_tiles, f_tiles),
                in_specs=[
                    pl.BlockSpec((tm, D_pad), lambda i, f: (i, 0)),
                    pl.BlockSpec((D_pad, tff), lambda i, f: (0, f)),
                    pl.BlockSpec((1, tff), lambda i, f: (0, f)),
                    pl.BlockSpec((tff, D_pad), lambda i, f: (f, 0)),
                    pl.BlockSpec((1, D_pad), lambda i, f: (0, 0)),
                ],
                out_specs=pl.BlockSpec((tm, D_pad), lambda i, f: (i, 0)),
                scratch_shapes=[pltpu.VMEM((tm, D_pad), jnp.float32)],
            ),
            compiler_params=pltpu.CompilerParams(
                dimension_semantics=("parallel", "arbitrary"),
                vmem_limit_bytes=vmem_limit),
            cost_estimate=cost,
        )(x2d, w1p, b1p, w2p, b2p)

    return out2d[:M, :D].reshape(B, S, D)


def positionwise_ffn(x, w1, b1, w2, b2, *, tile_m=512, tile_ff=None,
                     compute_dtype=jnp.bfloat16, inner_chunk=1024):
    """Convenience wrapper: packs weights per call.  For repeated forwards,
    call pack_ffn_params() once and use positionwise_ffn_packed()."""
    packed = pack_ffn_params(w1, b1, w2, b2, compute_dtype=compute_dtype)
    return positionwise_ffn_packed(x, packed, tile_m=tile_m, tile_ff=tile_ff,
                                   inner_chunk=inner_chunk)


# ----------------------------- demo / checks ---------------------------------

if __name__ == "__main__":
    key = jax.random.PRNGKey(0)

    def make_params(k, d_model, d_ff):
        k1, kb1, k2, kb2 = jax.random.split(k, 4)
        bound1 = 1.0 / (d_model ** 0.5)
        w1 = jax.random.uniform(k1, (d_model, d_ff), minval=-bound1,
                                maxval=bound1, dtype=jnp.float32)
        b1 = jax.random.uniform(kb1, (d_ff,), minval=-bound1, maxval=bound1,
                                dtype=jnp.float32)
        bound2 = 1.0 / (d_ff ** 0.5)
        w2 = jax.random.uniform(k2, (d_ff, d_model), minval=-bound2,
                                maxval=bound2, dtype=jnp.float32)
        b2 = jax.random.uniform(kb2, (d_model,), minval=-bound2, maxval=bound2,
                                dtype=jnp.float32)
        return w1, b1, w2, b2

    def ref_ffn(x, w1, b1, w2, b2):
        return jnp.maximum(x @ w1 + b1, 0.0) @ w2 + b2

    # --- Test 1: module's toy shapes, f32 operands (resident path) ----------
    B, S, d_model, d_ff = 2, 8, 32, 64
    kx, kp, key = jax.random.split(key, 3)
    x = jax.random.normal(kx, (B, S, d_model), dtype=jnp.float32)
    w1, b1, w2, b2 = make_params(kp, d_model, d_ff)
    ref = ref_ffn(x, w1, b1, w2, b2)

    out_f32 = jax.block_until_ready(
        positionwise_ffn(x, w1, b1, w2, b2, compute_dtype=jnp.float32))
    assert out_f32.shape == (B, S, d_model)
    assert jnp.allclose(out_f32, ref, atol=1e-4, rtol=1e-4), "f32 path mismatch"

    # --- Test 2: same shapes, bf16 MXU operands / f32 accumulation ----------
    out_bf16 = jax.block_until_ready(
        positionwise_ffn(x, w1, b1, w2, b2, compute_dtype=jnp.bfloat16))
    assert jnp.allclose(out_bf16, ref, atol=5e-2, rtol=5e-2), "bf16 path mismatch"

    # --- Test 3: forced d_ff-grid-tiled accumulator path (multi f-tile) -----
    B, S, d_model, d_ff = 2, 8, 128, 512
    kx, kp, key = jax.random.split(key, 3)
    x = jax.random.normal(kx, (B, S, d_model), dtype=jnp.float32)
    w1, b1, w2, b2 = make_params(kp, d_model, d_ff)
    ref = ref_ffn(x, w1, b1, w2, b2)

    out_tiled = jax.block_until_ready(
        positionwise_ffn(x, w1, b1, w2, b2, tile_ff=256,
                         compute_dtype=jnp.bfloat16))
    assert out_tiled.shape == (B, S, d_model)
    assert jnp.allclose(out_tiled, ref, atol=7e-2, rtol=7e-2), "ff-tiled mismatch"

    # --- Test 4: pre-packed weights + multi-chunk resident inner loop -------
    packed = pack_ffn_params(w1, b1, w2, b2, compute_dtype=jnp.bfloat16)
    out_pre = jax.block_until_ready(
        positionwise_ffn_packed(x, packed, inner_chunk=128))   # 4 inner chunks
    assert jnp.allclose(out_pre, ref, atol=7e-2, rtol=7e-2), "prepacked mismatch"

    print("KERNEL_OK")
</pallas_src>

<mosaic_0001>
module attributes {stable_mosaic.version = 11 : i64} {
  func.func @kernel(%arg0: i32, %arg1: memref<16x128xf32, #tpu.memory_space<vmem>>, %arg2: memref<128x128xf32, #tpu.memory_space<vmem>>, %arg3: memref<1x128xf32, #tpu.memory_space<vmem>>, %arg4: memref<128x128xf32, #tpu.memory_space<vmem>>, %arg5: memref<1x128xf32, #tpu.memory_space<vmem>>, %arg6: memref<16x128xf32, #tpu.memory_space<vmem>>, %arg7: memref<16x128xf32, #tpu.memory_space<vmem>>) attributes {dimension_semantics = [#tpu.dimension_semantics<parallel>], iteration_bounds = array<i64: 1>, scalar_prefetch = 0 : i64, scratch_operands = 1 : i64, tpu.core_type = #tpu.core_type<tc>, window_params = [{transform_indices = @transform_0, window_bounds = array<i64: 16, 128>}, {pipeline_mode = #tpu.pipeline_mode<synchronous>, transform_indices = @transform_1, window_bounds = array<i64: 128, 128>}, {pipeline_mode = #tpu.pipeline_mode<synchronous>, transform_indices = @transform_2, window_bounds = array<i64: 1, 128>}, {pipeline_mode = #tpu.pipeline_mode<synchronous>, transform_indices = @transform_3, window_bounds = array<i64: 128, 128>}, {pipeline_mode = #tpu.pipeline_mode<synchronous>, transform_indices = @transform_4, window_bounds = array<i64: 1, 128>}, {transform_indices = @transform_5, window_bounds = array<i64: 16, 128>}]} {
    %c0 = arith.constant 0 : index
    %c0_0 = arith.constant 0 : index
    %0 = vector.load %arg1[%c0, %c0_0] : memref<16x128xf32, #tpu.memory_space<vmem>>, vector<16x128xf32>
    %cst = arith.constant 0.000000e+00 : f32
    %1 = vector.broadcast %cst : f32 to vector<16x128xf32>
    %c0_1 = arith.constant 0 : index
    %c0_2 = arith.constant 0 : index
    %2 = vector.load %arg7[%c0_1, %c0_2] : memref<16x128xf32, #tpu.memory_space<vmem>>, vector<16x128xf32>
    tpu.vector_store %arg7[%c0_1, %c0_2], %1 {strides = array<i32>} : memref<16x128xf32, #tpu.memory_space<vmem>>, vector<16x128xf32>,
    %c0_3 = arith.constant 0 : index
    %c0_4 = arith.constant 0 : index
    %3 = vector.load %arg2[%c0_3, %c0_4] : memref<128x128xf32, #tpu.memory_space<vmem>>, vector<128x128xf32>
    %cst_5 = arith.constant dense<0.000000e+00> : vector<16x128xf32>
    %4 = tpu.matmul %0, %3, %cst_5 {dimension_numbers = #tpu.dot_dimension_numbers<[1], [0], [0], [1], [0, 0, 1, 1], [], []>} : vector<16x128xf32>, vector<128x128xf32>, vector<16x128xf32> -> vector<16x128xf32>
    %c0_6 = arith.constant 0 : index
    %c0_7 = arith.constant 0 : index
    %5 = vector.load %arg3[%c0_6, %c0_7] : memref<1x128xf32, #tpu.memory_space<vmem>>, vector<1x128xf32>
    %6 = vector.broadcast %5 : vector<1x128xf32> to vector<16x128xf32>
    %7 = arith.addf %4, %6 : vector<16x128xf32>
    %cst_8 = arith.constant 0.000000e+00 : f32
    %8 = vector.broadcast %cst_8 : f32 to vector<16x128xf32>
    %9 = arith.maximumf %7, %8 : vector<16x128xf32>
    %c0_9 = arith.constant 0 : index
    %c0_10 = arith.constant 0 : index
    %10 = vector.load %arg7[%c0_9, %c0_10] : memref<16x128xf32, #tpu.memory_space<vmem>>, vector<16x128xf32>
    %c0_11 = arith.constant 0 : index
    %c0_12 = arith.constant 0 : index
    %11 = vector.load %arg4[%c0_11, %c0_12] : memref<128x128xf32, #tpu.memory_space<vmem>>, vector<128x128xf32>
    %cst_13 = arith.constant dense<0.000000e+00> : vector<16x128xf32>
    %12 = tpu.matmul %9, %11, %cst_13 {dimension_numbers = #tpu.dot_dimension_numbers<[1], [0], [0], [1], [0, 0, 1, 1], [], []>} : vector<16x128xf32>, vector<128x128xf32>, vector<16x128xf32> -> vector<16x128xf32>
    %13 = arith.addf %10, %12 : vector<16x128xf32>
    %c0_14 = arith.constant 0 : index
    %c0_15 = arith.constant 0 : index
    %14 = vector.load %arg7[%c0_14, %c0_15] : memref<16x128xf32, #tpu.memory_space<vmem>>, vector<16x128xf32>
    tpu.vector_store %arg7[%c0_14, %c0_15], %13 {strides = array<i32>} : memref<16x128xf32, #tpu.memory_space<vmem>>, vector<16x128xf32>,
    %c0_16 = arith.constant 0 : index
    %c0_17 = arith.constant 0 : index
    %15 = vector.load %arg7[%c0_16, %c0_17] : memref<16x128xf32, #tpu.memory_space<vmem>>, vector<16x128xf32>
    %c0_18 = arith.constant 0 : index
    %c0_19 = arith.constant 0 : index
    %16 = vector.load %arg5[%c0_18, %c0_19] : memref<1x128xf32, #tpu.memory_space<vmem>>, vector<1x128xf32>
    %17 = vector.broadcast %16 : vector<1x128xf32> to vector<16x128xf32>
    %18 = arith.addf %15, %17 : vector<16x128xf32>
    %c0_20 = arith.constant 0 : index
    %c0_21 = arith.constant 0 : index
    %19 = vector.load %arg6[%c0_20, %c0_21] : memref<16x128xf32, #tpu.memory_space<vmem>>, vector<16x128xf32>
    tpu.vector_store %arg6[%c0_20, %c0_21], %18 {strides = array<i32>} : memref<16x128xf32, #tpu.memory_space<vmem>>, vector<16x128xf32>,
    return
  }
  func.func @transform_0(%arg0: i32) -> (i32, i32) {
    %c0_i32 = arith.constant 0 : i32
    %c0_i32_0 = arith.constant 0 : i32
    return %arg0, %c0_i32 : i32, i32
  }
  func.func @transform_1(%arg0: i32) -> (i32, i32) {
    %c0_i32 = arith.constant 0 : i32
    %c0_i32_0 = arith.constant 0 : i32
    %c0_i32_1 = arith.constant 0 : i32
    return %c0_i32, %c0_i32_0 : i32, i32
  }
  func.func @transform_2(%arg0: i32) -> (i32, i32) {
    %c0_i32 = arith.constant 0 : i32
    %c0_i32_0 = arith.constant 0 : i32
    %c0_i32_1 = arith.constant 0 : i32
    return %c0_i32, %c0_i32_0 : i32, i32
  }
  func.func @transform_3(%arg0: i32) -> (i32, i32) {
    %c0_i32 = arith.constant 0 : i32
    %c0_i32_0 = arith.constant 0 : i32
    %c0_i32_1 = arith.constant 0 : i32
    return %c0_i32, %c0_i32_0 : i32, i32
  }
  func.func @transform_4(%arg0: i32) -> (i32, i32) {
    %c0_i32 = arith.constant 0 : i32
    %c0_i32_0 = arith.constant 0 : i32
    %c0_i32_1 = arith.constant 0 : i32
    return %c0_i32, %c0_i32_0 : i32, i32
  }
  func.func @transform_5(%arg0: i32) -> (i32, i32) {
    %c0_i32 = arith.constant 0 : i32
    %c0_i32_0 = arith.constant 0 : i32
    return %arg0, %c0_i32 : i32, i32
  }
}

module attributes {stable_mosaic.version = 11 : i64} {
  func.func @kernel(%arg0: i32, %arg1: memref<16x128xf32, #tpu.memory_space<vmem>>, %arg2: memref<128x128xf32, #tpu.memory_space<vmem>>, %arg3: memref<1x128xf32, #tpu.memory_space<vmem>>, %arg4: memref<128x128xf32, #tpu.memory_space<vmem>>, %arg5: memref<1x128xf32, #tpu.memory_space<vmem>>, %arg6: memref<16x128xf32, #tpu.memory_space<vmem>>, %arg7: memref<16x128xf32, #tpu.memory_space<vmem>>) attributes {dimension_semantics = [#tpu.dimension_semantics<parallel>], iteration_bounds = array<i64: 1>, scalar_prefetch = 0 : i64, scratch_operands = 1 : i64, tpu.core_type = #tpu.core_type<tc>, window_params = [{transform_indices = @transform_0, window_bounds = array<i64: 16, 128>}, {pipeline_mode = #tpu.pipeline_mode<synchronous>, transform_indices = @transform_1, window_bounds = array<i64: 128, 128>}, {pipeline_mode = #tpu.pipeline_mode<synchronous>, transform_indices = @transform_2, window_bounds = array<i64: 1, 128>}, {pipeline_mode = #tpu.pipeline_mode<synchronous>, transform_indices = @transform_3, window_bounds = array<i64: 128, 128>}, {pipeline_mode = #tpu.pipeline_mode<synchronous>, transform_indices = @transform_4, window_bounds = array<i64: 1, 128>}, {transform_indices = @transform_5, window_bounds = array<i64: 16, 128>}]} {
    %c0 = arith.constant 0 : index
    %c0_0 = arith.constant 0 : index
    %0 = vector.load %arg1[%c0, %c0_0] : memref<16x128xf32, #tpu.memory_space<vmem>>, vector<16x128xf32>
    %cst = arith.constant 0.000000e+00 : f32
    %1 = vector.broadcast %cst : f32 to vector<16x128xf32>
    %c0_1 = arith.constant 0 : index
    %c0_2 = arith.constant 0 : index
    %2 = vector.load %arg7[%c0_1, %c0_2] : memref<16x128xf32, #tpu.memory_space<vmem>>, vector<16x128xf32>
    tpu.vector_store %arg7[%c0_1, %c0_2], %1 {strides = array<i32>} : memref<16x128xf32, #tpu.memory_space<vmem>>, vector<16x128xf32>,
    %c0_3 = arith.constant 0 : index
    %c0_4 = arith.constant 0 : index
    %3 = vector.load %arg2[%c0_3, %c0_4] : memref<128x128xf32, #tpu.memory_space<vmem>>, vector<128x128xf32>
    %cst_5 = arith.constant dense<0.000000e+00> : vector<16x128xf32>
    %4 = tpu.matmul %0, %3, %cst_5 {dimension_numbers = #tpu.dot_dimension_numbers<[1], [0], [0], [1], [0, 0, 1, 1], [], []>} : vector<16x128xf32>, vector<128x128xf32>, vector<16x128xf32> -> vector<16x128xf32>
    %c0_6 = arith.constant 0 : index
    %c0_7 = arith.constant 0 : index
    %5 = vector.load %arg3[%c0_6, %c0_7] : memref<1x128xf32, #tpu.memory_space<vmem>>, vector<1x128xf32>
    %6 = vector.broadcast %5 : vector<1x128xf32> to vector<16x128xf32>
    %7 = arith.addf %4, %6 : vector<16x128xf32>
    %cst_8 = arith.constant 0.000000e+00 : f32
    %8 = vector.broadcast %cst_8 : f32 to vector<16x128xf32>
    %9 = arith.maximumf %7, %8 : vector<16x128xf32>
    %c0_9 = arith.constant 0 : index
    %c0_10 = arith.constant 0 : index
    %10 = vector.load %arg7[%c0_9, %c0_10] : memref<16x128xf32, #tpu.memory_space<vmem>>, vector<16x128xf32>
    %c0_11 = arith.constant 0 : index
    %c0_12 = arith.constant 0 : index
    %11 = vector.load %arg4[%c0_11, %c0_12] : memref<128x128xf32, #tpu.memory_space<vmem>>, vector<128x128xf32>
    %cst_13 = arith.constant dense<0.000000e+00> : vector<16x128xf32>
    %12 = tpu.matmul %9, %11, %cst_13 {dimension_numbers = #tpu.dot_dimension_numbers<[1], [0], [0], [1], [0, 0, 1, 1], [], []>} : vector<16x128xf32>, vector<128x128xf32>, vector<16x128xf32> -> vector<16x128xf32>
    %13 = arith.addf %10, %12 : vector<16x128xf32>
    %c0_14 = arith.constant 0 : index
    %c0_15 = arith.constant 0 : index
    %14 = vector.load %arg7[%c0_14, %c0_15] : memref<16x128xf32, #tpu.memory_space<vmem>>, vector<16x128xf32>
    tpu.vector_store %arg7[%c0_14, %c0_15], %13 {strides = array<i32>} : memref<16x128xf32, #tpu.memory_space<vmem>>, vector<16x128xf32>,
    %c0_16 = arith.constant 0 : index
    %c0_17 = arith.constant 0 : index
    %15 = vector.load %arg7[%c0_16, %c0_17] : memref<16x128xf32, #tpu.memory_space<vmem>>, vector<16x128xf32>
    %c0_18 = arith.constant 0 : index
    %c0_19 = arith.constant 0 : index
    %16 = vector.load %arg5[%c0_18, %c0_19] : memref<1x128xf32, #tpu.memory_space<vmem>>, vector<1x128xf32>
    %17 = vector.broadcast %16 : vector<1x128xf32> to vector<16x128xf32>
    %18 = arith.addf %15, %17 : vector<16x128xf32>
    %c0_20 = arith.constant 0 : index
    %c0_21 = arith.constant 0 : index
    %19 = vector.load %arg6[%c0_20, %c0_21] : memref<16x128xf32, #tpu.memory_space<vmem>>, vector<16x128xf32>
    tpu.vector_store %arg6[%c0_20, %c0_21], %18 {strides = array<i32>} : memref<16x128xf32, #tpu.memory_space<vmem>>, vector<16x128xf32>,
    return
  }
  func.func @transform_0(%arg0: i32) -> (i32, i32) {
    %c0_i32 = arith.constant 0 : i32
    %c0_i32_0 = arith.constant 0 : i32
    return %arg0, %c0_i32 : i32, i32
  }
  func.func @transform_1(%arg0: i32) -> (i32, i32) {
    %c0_i32 = arith.constant 0 : i32
    %c0_i32_0 = arith.constant 0 : i32
    %c0_i32_1 = arith.constant 0 : i32
    return %c0_i32, %c0_i32_0 : i32, i32
  }
  func.func @transform_2(%arg0: i32) -> (i32, i32) {
    %c0_i32 = arith.constant 0 : i32
    %c0_i32_0 = arith.constant 0 : i32
    %c0_i32_1 = arith.constant 0 : i32
    return %c0_i32, %c0_i32_0 : i32, i32
  }
  func.func @transform_3(%arg0: i32) -> (i32, i32) {
    %c0_i32 = arith.constant 0 : i32
    %c0_i32_0 = arith.constant 0 : i32
    %c0_i32_1 = arith.constant 0 : i32
    return %c0_i32, %c0_i32_0 : i32, i32
  }
  func.func @transform_4(%arg0: i32) -> (i32, i32) {
    %c0_i32 = arith.constant 0 : i32
    %c0_i32_0 = arith.constant 0 : i32
    %c0_i32_1 = arith.constant 0 : i32
    return %c0_i32, %c0_i32_0 : i32, i32
  }
  func.func @transform_5(%arg0: i32) -> (i32, i32) {
    %c0_i32 = arith.constant 0 : i32
    %c0_i32_0 = arith.constant 0 : i32
    return %arg0, %c0_i32 : i32, i32
  }
}

</mosaic_0001>

<llo_original>
// kernel: tpu_custom_call.1
$region0: #{tpu_custom_call.1}
  #allocation0 [shape = 'u32[]', space=smem, size = 0x4, offset = 0x4, fixed_abs, tag = 'smem constant byte address 0x4 - core index']
  #allocation1 [shape = 'u32[144,128]{1,0:T(1,128)}', space=vmem, size = 0x12000, scoped, tag = 'internal scratch']
  #allocation2 [shape = 'f32[16,128]{1,0:T(8,128)}', space=vmem, size = 0x2000, scoped, tag = 'scratch operand']
  %s0 = inlined_call_operand.hbm [shape: f32[16,128], index: 0, kind: input, shape index: {}]
  %s1 = inlined_call_operand.hbm [shape: f32[128,128], index: 1, kind: input, shape index: {}]
  %s2 = inlined_call_operand.vmem [shape: f32[1,128], index: 2, kind: input, shape index: {}]
  %s3 = inlined_call_operand.hbm [shape: f32[128,128], index: 3, kind: input, shape index: {}]
  %s4 = inlined_call_operand.vmem [shape: f32[1,128], index: 4, kind: input, shape index: {}]
  %s5 = inlined_call_operand.hbm [shape: f32[16,128], index: 5, kind: output, shape index: {}]
  %s6 = sld [smem:[#allocation0]]
  $region42: #{tpu_custom_call.1} parent=0
    _
  %s8 = ssub.s32 1, %s6
  %s9 = scalar_select 0, %s8, %s6
  $region1: #{tpu_custom_call.1} parent=0
    #allocation3 [shape = 'u8[8192]{0}', space=vmem, size = 0x2000, scoped, tag = 'input window, operand 0, single buffered']
    #allocation4 [shape = 's32[1]{0}', space=sflag, size = 0x4, scoped, tag = 'scoped memory for tpu_custom_call.1']
    #allocation5 [shape = 's32[1]{0}', space=sflag, size = 0x4, scoped, tag = 'scoped memory for tpu_custom_call.1']
    #allocation6 [shape = 'u8[65536]{0}', space=vmem, size = 0x10000, scoped, tag = 'input window, operand 1, single buffered']
    #allocation7 [shape = 's32[1]{0}', space=sflag, size = 0x4, scoped, tag = 'scoped memory for tpu_custom_call.1']
    #allocation8 [shape = 'u8[65536]{0}', space=vmem, size = 0x10000, scoped, tag = 'input window, operand 3, single buffered']
    #allocation9 [shape = 'u8[8192]{0}', space=vmem, size = 0x2000, scoped, tag = 'output window, operand 0, single buffered']
    %10 = vsyncpa [#allocation4], 0
    %11 = vsyncpa [#allocation7], 0
    %12 = vsyncpa [#allocation5], 0
    // Predicated region
    $region2: #{tpu_custom_call.1} parent=1 // pred_check
      _
    $region3: #{tpu_custom_call.1} parent=1 // pred_check_branch
      %14 = sbr.rel (0) target = $region5
    $region4: #{tpu_custom_call.1} parent=1 // pred_region
      %s16 = ssub.s32 256, 256
      %17 = vsyncadd [#allocation4], %s16
      %s18 = sshll.u32 [#allocation3], 4
      %s19 = int_to_ptr.vmem [resolvable:$true] %s18
      %24 = dma.hbm_to_vmem [thread:$0]  %s0, 256, %s19, [#allocation4], 128, 128, 8
    $region5: #{tpu_custom_call.1} parent=1 // pred_fallthru
      _
    // Predicated region
    $region6: #{tpu_custom_call.1} parent=1 // pred_check
      _
    $region7: #{tpu_custom_call.1} parent=1 // pred_check_branch
      %26 = sbr.rel (0) target = $region9
    $region8: #{tpu_custom_call.1} parent=1 // pred_region
      %s28 = ssub.s32 2048, 2048
      %29 = vsyncadd [#allocation7], %s28
      %s30 = sshll.u32 [#allocation6], 4
      %s31 = int_to_ptr.vmem [resolvable:$true] %s30
      %36 = dma.hbm_to_vmem [thread:$0]  %s1, 2048, %s31, [#allocation7], 128, 128, 8
    $region9: #{tpu_custom_call.1} parent=1 // pred_fallthru
      _
    // Predicated region
    $region10: #{tpu_custom_call.1} parent=1 // pred_check
      _
    $region11: #{tpu_custom_call.1} parent=1 // pred_check_branch
      %38 = sbr.rel (0) target = $region13
    $region12: #{tpu_custom_call.1} parent=1 // pred_region
      _
    $region13: #{tpu_custom_call.1} parent=1 // pred_fallthru
      _
    // Predicated region
    $region14: #{tpu_custom_call.1} parent=1 // pred_check
      _
    $region15: #{tpu_custom_call.1} parent=1 // pred_check_branch
      %40 = sbr.rel (0) target = $region17
    $region16: #{tpu_custom_call.1} parent=1 // pred_region
      %s42 = ssub.s32 2048, 2048
      %43 = vsyncadd [#allocation7], %s42
      %s44 = sshll.u32 [#allocation8], 4
      %s45 = int_to_ptr.vmem [resolvable:$true] %s44
      %50 = dma.hbm_to_vmem [thread:$0]  %s3, 2048, %s45, [#allocation7], 128, 128, 8
    $region17: #{tpu_custom_call.1} parent=1 // pred_fallthru
      _
    // Predicated region
    $region18: #{tpu_custom_call.1} parent=1 // pred_check
      _
    $region19: #{tpu_custom_call.1} parent=1 // pred_check_branch
      %52 = sbr.rel (0) target = $region21
    $region20: #{tpu_custom_call.1} parent=1 // pred_region
      _
    $region21: #{tpu_custom_call.1} parent=1 // pred_fallthru
      _
    // Predicated region
    $region22: #{tpu_custom_call.1} parent=1 // pred_check
      _
    $region23: #{tpu_custom_call.1} parent=1 // pred_check_branch
      %54 = sbr.rel (0) target = $region25
    $region24: #{tpu_custom_call.1} parent=1 // pred_region
      %55 = dma.done [#allocation4], 256
    $region25: #{tpu_custom_call.1} parent=1 // pred_fallthru
      _
    // Predicated region
    $region26: #{tpu_custom_call.1} parent=1 // pred_check
      _
    $region27: #{tpu_custom_call.1} parent=1 // pred_check_branch
      %57 = sbr.rel (0) target = $region29
    $region28: #{tpu_custom_call.1} parent=1 // pred_region
      %58 = dma.done [#allocation7], 2048
    $region29: #{tpu_custom_call.1} parent=1 // pred_fallthru
      _
    // Predicated region
    $region30: #{tpu_custom_call.1} parent=1 // pred_check
      _
    $region31: #{tpu_custom_call.1} parent=1 // pred_check_branch
      %60 = sbr.rel (0) target = $region33
    $region32: #{tpu_custom_call.1} parent=1 // pred_region
      %61 = dma.done [#allocation7], 2048
    $region33: #{tpu_custom_call.1} parent=1 // pred_fallthru
      _
    %v62 = vld [vmem:[#allocation3] sm:$0xff]
    %v63 = vld [vmem:[#allocation3 + $0x8] sm:$0xff]
    %64 = vst [vmem:[#allocation2] sm:$0xff] 0.0
    %65 = vst [vmem:[#allocation2 + $0x8] sm:$0xff] 0.0
    %v66 = vld [vmem:[#allocation6] sm:$0xff]
    %v67 = vld [vmem:[#allocation6 + $0x8] sm:$0xff]
    %v68 = vld [vmem:[#allocation6 + $0x10] sm:$0xff]
    %v69 = vld [vmem:[#allocation6 + $0x18] sm:$0xff]
    %v70 = vld [vmem:[#allocation6 + $0x20] sm:$0xff]
    %v71 = vld [vmem:[#allocation6 + $0x28] sm:$0xff]
    %v72 = vld [vmem:[#allocation6 + $0x30] sm:$0xff]
    %v73 = vld [vmem:[#allocation6 + $0x38] sm:$0xff]
    %v74 = vld [vmem:[#allocation6 + $0x40] sm:$0xff]
    %v75 = vld [vmem:[#allocation6 + $0x48] sm:$0xff]
    %v76 = vld [vmem:[#allocation6 + $0x50] sm:$0xff]
    %v77 = vld [vmem:[#allocation6 + $0x58] sm:$0xff]
    %v78 = vld [vmem:[#allocation6 + $0x60] sm:$0xff]
    %v79 = vld [vmem:[#allocation6 + $0x68] sm:$0xff]
    %v80 = vld [vmem:[#allocation6 + $0x70] sm:$0xff]
    %v81 = vld [vmem:[#allocation6 + $0x78] sm:$0xff]
    %v82 = vld [vmem:[%s2] sm:$0x1]
    %v84 = vlaneseq
    %v85 = vshrl.u32 %v84, 7
    %v86 = vsub.s32 0, %v85
    %v87 = vrot.slane %v82, %v86
    %89 = vmatprep.subr.mxu0 0.0
    %90 = vmatpush1.msra.mxu0 %v81
    %91 = vmatprep.subr.mxu0 0.0
    %92 = vmatpush1.msra.mxu0 %v80
    %93 = vmatprep.subr.mxu0 0.0
    %94 = vmatpush1.msra.mxu0 %v79
    %95 = vmatprep.subr.mxu0 0.0
    %96 = vmatpush1.msra.mxu0 %v78
    %97 = vmatprep.subr.mxu0 0.0
    %98 = vmatpush1.msra.mxu0 %v77
    %99 = vmatprep.subr.mxu0 0.0
    %100 = vmatpush1.msra.mxu0 %v76
    %101 = vmatprep.subr.mxu0 0.0
    %102 = vmatpush1.msra.mxu0 %v75
    %103 = vmatprep.subr.mxu0 0.0
    %104 = vmatpush1.msra.mxu0 %v74
    %105 = vmatprep.subr.mxu0 0.0
    %106 = vmatpush1.msra.mxu0 %v73
    %107 = vmatprep.subr.mxu0 0.0
    %108 = vmatpush1.msra.mxu0 %v72
    %109 = vmatprep.subr.mxu0 0.0
    %110 = vmatpush1.msra.mxu0 %v71
    %111 = vmatprep.subr.mxu0 0.0
    %112 = vmatpush1.msra.mxu0 %v70
    %113 = vmatprep.subr.mxu0 0.0
    %114 = vmatpush1.msra.mxu0 %v69
    %115 = vmatprep.subr.mxu0 0.0
    %116 = vmatpush1.msra.mxu0 %v68
    %117 = vmatprep.subr.mxu0 0.0
    %118 = vmatpush1.msra.mxu0 %v67
    %119 = vmatprep.subr.mxu0 0.0
    %120 = vmatpush1.msra.mxu0 %v66
    %121 = vmatprep.subr.mxu0 0.0
    %122 = vmatpush2.msra.mxu0 0.0
    %123 = vmatprep.subr.mxu0 0.0
    %124 = vmatpush2.msra.mxu0 0.0
    %125 = vmatprep.subr.mxu0 0.0
    %126 = vmatpush2.msra.mxu0 0.0
    %127 = vmatprep.subr.mxu0 0.0
    %128 = vmatpush2.msra.mxu0 0.0
    %129 = vmatprep.subr.mxu0 0.0
    %130 = vmatpush2.msra.mxu0 0.0
    %131 = vmatprep.subr.mxu0 0.0
    %132 = vmatpush2.msra.mxu0 0.0
    %133 = vmatprep.subr.mxu0 0.0
    %134 = vmatpush2.msra.mxu0 0.0
    %135 = vmatprep.subr.mxu0 0.0
    %136 = vmatpush2.msra.mxu0 0.0
    %137 = vmatprep.subr.mxu0 0.0
    %138 = vmatpush2.msra.mxu0 0.0
    %139 = vmatprep.subr.mxu0 0.0
    %140 = vmatpush2.msra.mxu0 0.0
    %141 = vmatprep.subr.mxu0 0.0
    %142 = vmatpush2.msra.mxu0 0.0
    %143 = vmatprep.subr.mxu0 0.0
    %144 = vmatpush2.msra.mxu0 0.0
    %145 = vmatprep.subr.mxu0 0.0
    %146 = vmatpush2.msra.mxu0 0.0
    %147 = vmatprep.subr.mxu0 0.0
    %148 = vmatpush2.msra.mxu0 0.0
    %149 = vmatprep.subr.mxu0 0.0
    %150 = vmatpush2.msra.mxu0 0.0
    %151 = vmatprep.subr.mxu0 0.0
    %152 = vmatpush2.msra.mxu0 0.0
    %153 = vmatprep.mubr.f32.mxu0 0.0
    %154 = vmatmul.mubr.f32.gmra.mxu0 %v62
    %v155 = vpop.f32.mrf.mxu0
    %v156 = vadd.f32 %v87, %v155
    %v157 = vpop.f32.mrf.mxu0
    %158 = vmatprep.mubr.f32.mxu0 0.0
    %159 = vmatmul.mubr.f32.gmra.mxu0 %v63
    %v160 = vpop.f32.mrf.mxu0
    %v161 = vadd.f32 %v87, %v160
    %v162 = vpop.f32.mrf.mxu0
    %163 = vdwg.mxu0
    %v164 = vmax.f32 %v156, 0.0
    %v165 = vmax.f32 %v161, 0.0
    %v166 = vld [vmem:[#allocation2] sm:$0xff]
    %v167 = vld [vmem:[#allocation2 + $0x8] sm:$0xff]
    %v168 = vld [vmem:[#allocation8] sm:$0xff]
    %v169 = vld [vmem:[#allocation8 + $0x8] sm:$0xff]
    %v170 = vld [vmem:[#allocation8 + $0x10] sm:$0xff]
    %v171 = vld [vmem:[#allocation8 + $0x18] sm:$0xff]
    %v172 = vld [vmem:[#allocation8 + $0x20] sm:$0xff]
    %v173 = vld [vmem:[#allocation8 + $0x28] sm:$0xff]
    %v174 = vld [vmem:[#allocation8 + $0x30] sm:$0xff]
    %v175 = vld [vmem:[#allocation8 + $0x38] sm:$0xff]
    %v176 = vld [vmem:[#allocation8 + $0x40] sm:$0xff]
    %v177 = vld [vmem:[#allocation8 + $0x48] sm:$0xff]
    %v178 = vld [vmem:[#allocation8 + $0x50] sm:$0xff]
    %v179 = vld [vmem:[#allocation8 + $0x58] sm:$0xff]
    %v180 = vld [vmem:[#allocation8 + $0x60] sm:$0xff]
    %v181 = vld [vmem:[#allocation8 + $0x68] sm:$0xff]
    %v182 = vld [vmem:[#allocation8 + $0x70] sm:$0xff]
    %v183 = vld [vmem:[#allocation8 + $0x78] sm:$0xff]
    %184 = vmatprep.subr.mxu0 0.0
    %185 = vmatpush1.msra.mxu0 %v183
    %186 = vmatprep.subr.mxu0 0.0
    %187 = vmatpush1.msra.mxu0 %v182
    %188 = vmatprep.subr.mxu0 0.0
    %189 = vmatpush1.msra.mxu0 %v181
    %190 = vmatprep.subr.mxu0 0.0
    %191 = vmatpush1.msra.mxu0 %v180
    %192 = vmatprep.subr.mxu0 0.0
    %193 = vmatpush1.msra.mxu0 %v179
    %194 = vmatprep.subr.mxu0 0.0
    %195 = vmatpush1.msra.mxu0 %v178
    %196 = vmatprep.subr.mxu0 0.0
    %197 = vmatpush1.msra.mxu0 %v177
    %198 = vmatprep.subr.mxu0 0.0
    %199 = vmatpush1.msra.mxu0 %v176
    %200 = vmatprep.subr.mxu0 0.0
    %201 = vmatpush1.msra.mxu0 %v175
    %202 = vmatprep.subr.mxu0 0.0
    %203 = vmatpush1.msra.mxu0 %v174
    %204 = vmatprep.subr.mxu0 0.0
    %205 = vmatpush1.msra.mxu0 %v173
    %206 = vmatprep.subr.mxu0 0.0
    %207 = vmatpush1.msra.mxu0 %v172
    %208 = vmatprep.subr.mxu0 0.0
    %209 = vmatpush1.msra.mxu0 %v171
    %210 = vmatprep.subr.mxu0 0.0
    %211 = vmatpush1.msra.mxu0 %v170
    %212 = vmatprep.subr.mxu0 0.0
    %213 = vmatpush1.msra.mxu0 %v169
    %214 = vmatprep.subr.mxu0 0.0
    %215 = vmatpush1.msra.mxu0 %v168
    %216 = vmatprep.subr.mxu0 0.0
    %217 = vmatpush2.msra.mxu0 0.0
    %218 = vmatprep.subr.mxu0 0.0
    %219 = vmatpush2.msra.mxu0 0.0
    %220 = vmatprep.subr.mxu0 0.0
    %221 = vmatpush2.msra.mxu0 0.0
    %222 = vmatprep.subr.mxu0 0.0
    %223 = vmatpush2.msra.mxu0 0.0
    %224 = vmatprep.subr.mxu0 0.0
    %225 = vmatpush2.msra.mxu0 0.0
    %226 = vmatprep.subr.mxu0 0.0
    %227 = vmatpush2.msra.mxu0 0.0
    %228 = vmatprep.subr.mxu0 0.0
    %229 = vmatpush2.msra.mxu0 0.0
    %230 = vmatprep.subr.mxu0 0.0
    %231 = vmatpush2.msra.mxu0 0.0
    %232 = vmatprep.subr.mxu0 0.0
    %233 = vmatpush2.msra.mxu0 0.0
    %234 = vmatprep.subr.mxu0 0.0
    %235 = vmatpush2.msra.mxu0 0.0
    %236 = vmatprep.subr.mxu0 0.0
    %237 = vmatpush2.msra.mxu0 0.0
    %238 = vmatprep.subr.mxu0 0.0
    %239 = vmatpush2.msra.mxu0 0.0
    %240 = vmatprep.subr.mxu0 0.0
    %241 = vmatpush2.msra.mxu0 0.0
    %242 = vmatprep.subr.mxu0 0.0
    %243 = vmatpush2.msra.mxu0 0.0
    %244 = vmatprep.subr.mxu0 0.0
    %245 = vmatpush2.msra.mxu0 0.0
    %246 = vmatprep.subr.mxu0 0.0
    %247 = vmatpush2.msra.mxu0 0.0
    %248 = vmatprep.mubr.f32.mxu0 0.0
    %249 = vmatmul.mubr.f32.gmra.mxu0 %v164
    %v250 = vpop.f32.mrf.mxu0
    %v251 = vadd.f32 0.0, %v250
    %v252 = vpop.f32.mrf.mxu0
    %253 = vmatprep.mubr.f32.mxu0 0.0
    %254 = vmatmul.mubr.f32.gmra.mxu0 %v165
    %v255 = vpop.f32.mrf.mxu0
    %v256 = vadd.f32 0.0, %v255
    %v257 = vpop.f32.mrf.mxu0
    %258 = vdwg.mxu0
    %v259 = vadd.f32 %v166, %v251
    %v260 = vadd.f32 %v167, %v256
    %261 = vst [vmem:[#allocation2] sm:$0xff] %v259
    %262 = vst [vmem:[#allocation2 + $0x8] sm:$0xff] %v260
    %v263 = vld [vmem:[#allocation2] sm:$0xff]
    %v264 = vld [vmem:[#allocation2 + $0x8] sm:$0xff]
    %v265 = vld [vmem:[%s4] sm:$0x1]
    %v267 = vlaneseq
    %v268 = vshrl.u32 %v267, 7
    %v269 = vsub.s32 0, %v268
    %v270 = vrot.slane %v265, %v269
    %v272 = vadd.f32 %v263, %v270
    %v273 = vadd.f32 %v264, %v270
    %274 = vst [vmem:[#allocation9] sm:$0xff] %v272
    %275 = vst [vmem:[#allocation9 + $0x8] sm:$0xff] %v273
    // Predicated region
    $region34: #{tpu_custom_call.1} parent=1 // pred_check
      _
    $region35: #{tpu_custom_call.1} parent=1 // pred_check_branch
      %277 = sbr.rel (0) target = $region37
    $region36: #{tpu_custom_call.1} parent=1 // pred_region
      %s279 = ssub.s32 256, 256
      %280 = vsyncadd [#allocation5], %s279
      %s281 = sshll.u32 [#allocation9], 4
      %s282 = int_to_ptr.vmem [resolvable:$true] %s281
      %287 = dma.vmem_to_hbm [thread:$0]  %s282, 256, %s5, [#allocation5], 128, 128, 8
    $region37: #{tpu_custom_call.1} parent=1 // pred_fallthru
      _
    // Predicated region
    $region38: #{tpu_custom_call.1} parent=1 // pred_check
      _
    $region39: #{tpu_custom_call.1} parent=1 // pred_check_branch
      %289 = sbr.rel (0) target = $region41
    $region40: #{tpu_custom_call.1} parent=1 // pred_region
      %290 = dma.done [#allocation5], 256
    $region41: #{tpu_custom_call.1} parent=1 // pred_fallthru
      _
    %291 = vsyncpa [#allocation4], 1
    %292 = vsyncpa [#allocation7], 1
    %293 = vsyncpa [#allocation5], 1

// kernel: tpu_custom_call.1
$region0: #{tpu_custom_call.1}
  #allocation0 [shape = 'u32[]', space=smem, size = 0x4, offset = 0x4, fixed_abs, tag = 'smem constant byte address 0x4 - core index']
  #allocation1 [shape = 'u32[144,128]{1,0:T(1,128)}', space=vmem, size = 0x12000, scoped, tag = 'internal scratch']
  #allocation2 [shape = 'f32[16,128]{1,0:T(8,128)}', space=vmem, size = 0x2000, scoped, tag = 'scratch operand']
  %s0 = inlined_call_operand.hbm [shape: f32[16,128], index: 0, kind: input, shape index: {}]
  %s1 = inlined_call_operand.hbm [shape: f32[128,128], index: 1, kind: input, shape index: {}]
  %s2 = inlined_call_operand.vmem [shape: f32[1,128], index: 2, kind: input, shape index: {}]
  %s3 = inlined_call_operand.hbm [shape: f32[128,128], index: 3, kind: input, shape index: {}]
  %s4 = inlined_call_operand.vmem [shape: f32[1,128], index: 4, kind: input, shape index: {}]
  %s5 = inlined_call_operand.hbm [shape: f32[16,128], index: 5, kind: output, shape index: {}]
  %s6 = sld [smem:[#allocation0]]
  $region42: #{tpu_custom_call.1} parent=0
    _
  %s8 = ssub.s32 1, %s6
  %s9 = scalar_select 0, %s8, %s6
  $region1: #{tpu_custom_call.1} parent=0
    #allocation3 [shape = 'u8[8192]{0}', space=vmem, size = 0x2000, scoped, tag = 'input window, operand 0, single buffered']
    #allocation4 [shape = 's32[1]{0}', space=sflag, size = 0x4, scoped, tag = 'scoped memory for tpu_custom_call.1']
    #allocation5 [shape = 's32[1]{0}', space=sflag, size = 0x4, scoped, tag = 'scoped memory for tpu_custom_call.1']
    #allocation6 [shape = 'u8[65536]{0}', space=vmem, size = 0x10000, scoped, tag = 'input window, operand 1, single buffered']
    #allocation7 [shape = 's32[1]{0}', space=sflag, size = 0x4, scoped, tag = 'scoped memory for tpu_custom_call.1']
    #allocation8 [shape = 'u8[65536]{0}', space=vmem, size = 0x10000, scoped, tag = 'input window, operand 3, single buffered']
    #allocation9 [shape = 'u8[8192]{0}', space=vmem, size = 0x2000, scoped, tag = 'output window, operand 0, single buffered']
    %10 = vsyncpa [#allocation4], 0
    %11 = vsyncpa [#allocation7], 0
    %12 = vsyncpa [#allocation5], 0
    // Predicated region
    $region2: #{tpu_custom_call.1} parent=1 // pred_check
      _
    $region3: #{tpu_custom_call.1} parent=1 // pred_check_branch
      %14 = sbr.rel (0) target = $region5
    $region4: #{tpu_custom_call.1} parent=1 // pred_region
      %s16 = ssub.s32 256, 256
      %17 = vsyncadd [#allocation4], %s16
      %s18 = sshll.u32 [#allocation3], 4
      %s19 = int_to_ptr.vmem [resolvable:$true] %s18
      %24 = dma.hbm_to_vmem [thread:$0]  %s0, 256, %s19, [#allocation4], 128, 128, 8
    $region5: #{tpu_custom_call.1} parent=1 // pred_fallthru
      _
    // Predicated region
    $region6: #{tpu_custom_call.1} parent=1 // pred_check
      _
    $region7: #{tpu_custom_call.1} parent=1 // pred_check_branch
      %26 = sbr.rel (0) target = $region9
    $region8: #{tpu_custom_call.1} parent=1 // pred_region
      %s28 = ssub.s32 2048, 2048
      %29 = vsyncadd [#allocation7], %s28
      %s30 = sshll.u32 [#allocation6], 4
      %s31 = int_to_ptr.vmem [resolvable:$true] %s30
      %36 = dma.hbm_to_vmem [thread:$0]  %s1, 2048, %s31, [#allocation7], 128, 128, 8
    $region9: #{tpu_custom_call.1} parent=1 // pred_fallthru
      _
    // Predicated region
    $region10: #{tpu_custom_call.1} parent=1 // pred_check
      _
    $region11: #{tpu_custom_call.1} parent=1 // pred_check_branch
      %38 = sbr.rel (0) target = $region13
    $region12: #{tpu_custom_call.1} parent=1 // pred_region
      _
    $region13: #{tpu_custom_call.1} parent=1 // pred_fallthru
      _
    // Predicated region
    $region14: #{tpu_custom_call.1} parent=1 // pred_check
      _
    $region15: #{tpu_custom_call.1} parent=1 // pred_check_branch
      %40 = sbr.rel (0) target = $region17
    $region16: #{tpu_custom_call.1} parent=1 // pred_region
      %s42 = ssub.s32 2048, 2048
      %43 = vsyncadd [#allocation7], %s42
      %s44 = sshll.u32 [#allocation8], 4
      %s45 = int_to_ptr.vmem [resolvable:$true] %s44
      %50 = dma.hbm_to_vmem [thread:$0]  %s3, 2048, %s45, [#allocation7], 128, 128, 8
    $region17: #{tpu_custom_call.1} parent=1 // pred_fallthru
      _
    // Predicated region
    $region18: #{tpu_custom_call.1} parent=1 // pred_check
      _
    $region19: #{tpu_custom_call.1} parent=1 // pred_check_branch
      %52 = sbr.rel (0) target = $region21
    $region20: #{tpu_custom_call.1} parent=1 // pred_region
      _
    $region21: #{tpu_custom_call.1} parent=1 // pred_fallthru
      _
    // Predicated region
    $region22: #{tpu_custom_call.1} parent=1 // pred_check
      _
    $region23: #{tpu_custom_call.1} parent=1 // pred_check_branch
      %54 = sbr.rel (0) target = $region25
    $region24: #{tpu_custom_call.1} parent=1 // pred_region
      %55 = dma.done [#allocation4], 256
    $region25: #{tpu_custom_call.1} parent=1 // pred_fallthru
      _
    // Predicated region
    $region26: #{tpu_custom_call.1} parent=1 // pred_check
      _
    $region27: #{tpu_custom_call.1} parent=1 // pred_check_branch
      %57 = sbr.rel (0) target = $region29
    $region28: #{tpu_custom_call.1} parent=1 // pred_region
      %58 = dma.done [#allocation7], 2048
    $region29: #{tpu_custom_call.1} parent=1 // pred_fallthru
      _
    // Predicated region
    $region30: #{tpu_custom_call.1} parent=1 // pred_check
      _
    $region31: #{tpu_custom_call.1} parent=1 // pred_check_branch
      %60 = sbr.rel (0) target = $region33
    $region32: #{tpu_custom_call.1} parent=1 // pred_region
      %61 = dma.done [#allocation7], 2048
    $region33: #{tpu_custom_call.1} parent=1 // pred_fallthru
      _
    %v62 = vld [vmem:[#allocation3] sm:$0xff]
    %v63 = vld [vmem:[#allocation3 + $0x8] sm:$0xff]
    %64 = vst [vmem:[#allocation2] sm:$0xff] 0.0
    %65 = vst [vmem:[#allocation2 + $0x8] sm:$0xff] 0.0
    %v66 = vld [vmem:[#allocation6] sm:$0xff]
    %v67 = vld [vmem:[#allocation6 + $0x8] sm:$0xff]
    %v68 = vld [vmem:[#allocation6 + $0x10] sm:$0xff]
    %v69 = vld [vmem:[#allocation6 + $0x18] sm:$0xff]
    %v70 = vld [vmem:[#allocation6 + $0x20] sm:$0xff]
    %v71 = vld [vmem:[#allocation6 + $0x28] sm:$0xff]
    %v72 = vld [vmem:[#allocation6 + $0x30] sm:$0xff]
    %v73 = vld [vmem:[#allocation6 + $0x38] sm:$0xff]
    %v74 = vld [vmem:[#allocation6 + $0x40] sm:$0xff]
    %v75 = vld [vmem:[#allocation6 + $0x48] sm:$0xff]
    %v76 = vld [vmem:[#allocation6 + $0x50] sm:$0xff]
    %v77 = vld [vmem:[#allocation6 + $0x58] sm:$0xff]
    %v78 = vld [vmem:[#allocation6 + $0x60] sm:$0xff]
    %v79 = vld [vmem:[#allocation6 + $0x68] sm:$0xff]
    %v80 = vld [vmem:[#allocation6 + $0x70] sm:$0xff]
    %v81 = vld [vmem:[#allocation6 + $0x78] sm:$0xff]
    %v82 = vld [vmem:[%s2] sm:$0x1]
    %v84 = vlaneseq
    %v85 = vshrl.u32 %v84, 7
    %v86 = vsub.s32 0, %v85
    %v87 = vrot.slane %v82, %v86
    %89 = vmatprep.subr.mxu0 0.0
    %90 = vmatpush1.msra.mxu0 %v81
    %91 = vmatprep.subr.mxu0 0.0
    %92 = vmatpush1.msra.mxu0 %v80
    %93 = vmatprep.subr.mxu0 0.0
    %94 = vmatpush1.msra.mxu0 %v79
    %95 = vmatprep.subr.mxu0 0.0
    %96 = vmatpush1.msra.mxu0 %v78
    %97 = vmatprep.subr.mxu0 0.0
    %98 = vmatpush1.msra.mxu0 %v77
    %99 = vmatprep.subr.mxu0 0.0
    %100 = vmatpush1.msra.mxu0 %v76
    %101 = vmatprep.subr.mxu0 0.0
    %102 = vmatpush1.msra.mxu0 %v75
    %103 = vmatprep.subr.mxu0 0.0
    %104 = vmatpush1.msra.mxu0 %v74
    %105 = vmatprep.subr.mxu0 0.0
    %106 = vmatpush1.msra.mxu0 %v73
    %107 = vmatprep.subr.mxu0 0.0
    %108 = vmatpush1.msra.mxu0 %v72
    %109 = vmatprep.subr.mxu0 0.0
    %110 = vmatpush1.msra.mxu0 %v71
    %111 = vmatprep.subr.mxu0 0.0
    %112 = vmatpush1.msra.mxu0 %v70
    %113 = vmatprep.subr.mxu0 0.0
    %114 = vmatpush1.msra.mxu0 %v69
    %115 = vmatprep.subr.mxu0 0.0
    %116 = vmatpush1.msra.mxu0 %v68
    %117 = vmatprep.subr.mxu0 0.0
    %118 = vmatpush1.msra.mxu0 %v67
    %119 = vmatprep.subr.mxu0 0.0
    %120 = vmatpush1.msra.mxu0 %v66
    %121 = vmatprep.subr.mxu0 0.0
    %122 = vmatpush2.msra.mxu0 0.0
    %123 = vmatprep.subr.mxu0 0.0
    %124 = vmatpush2.msra.mxu0 0.0
    %125 = vmatprep.subr.mxu0 0.0
    %126 = vmatpush2.msra.mxu0 0.0
    %127 = vmatprep.subr.mxu0 0.0
    %128 = vmatpush2.msra.mxu0 0.0
    %129 = vmatprep.subr.mxu0 0.0
    %130 = vmatpush2.msra.mxu0 0.0
    %131 = vmatprep.subr.mxu0 0.0
    %132 = vmatpush2.msra.mxu0 0.0
    %133 = vmatprep.subr.mxu0 0.0
    %134 = vmatpush2.msra.mxu0 0.0
    %135 = vmatprep.subr.mxu0 0.0
    %136 = vmatpush2.msra.mxu0 0.0
    %137 = vmatprep.subr.mxu0 0.0
    %138 = vmatpush2.msra.mxu0 0.0
    %139 = vmatprep.subr.mxu0 0.0
    %140 = vmatpush2.msra.mxu0 0.0
    %141 = vmatprep.subr.mxu0 0.0
    %142 = vmatpush2.msra.mxu0 0.0
    %143 = vmatprep.subr.mxu0 0.0
    %144 = vmatpush2.msra.mxu0 0.0
    %145 = vmatprep.subr.mxu0 0.0
    %146 = vmatpush2.msra.mxu0 0.0
    %147 = vmatprep.subr.mxu0 0.0
    %148 = vmatpush2.msra.mxu0 0.0
    %149 = vmatprep.subr.mxu0 0.0
    %150 = vmatpush2.msra.mxu0 0.0
    %151 = vmatprep.subr.mxu0 0.0
    %152 = vmatpush2.msra.mxu0 0.0
    %153 = vmatprep.mubr.f32.mxu0 0.0
    %154 = vmatmul.mubr.f32.gmra.mxu0 %v62
    %v155 = vpop.f32.mrf.mxu0
    %v156 = vadd.f32 %v87, %v155
    %v157 = vpop.f32.mrf.mxu0
    %158 = vmatprep.mubr.f32.mxu0 0.0
    %159 = vmatmul.mubr.f32.gmra.mxu0 %v63
    %v160 = vpop.f32.mrf.mxu0
    %v161 = vadd.f32 %v87, %v160
    %v162 = vpop.f32.mrf.mxu0
    %163 = vdwg.mxu0
    %v164 = vmax.f32 %v156, 0.0
    %v165 = vmax.f32 %v161, 0.0
    %v166 = vld [vmem:[#allocation2] sm:$0xff]
    %v167 = vld [vmem:[#allocation2 + $0x8] sm:$0xff]
    %v168 = vld [vmem:[#allocation8] sm:$0xff]
    %v169 = vld [vmem:[#allocation8 + $0x8] sm:$0xff]
    %v170 = vld [vmem:[#allocation8 + $0x10] sm:$0xff]
    %v171 = vld [vmem:[#allocation8 + $0x18] sm:$0xff]
    %v172 = vld [vmem:[#allocation8 + $0x20] sm:$0xff]
    %v173 = vld [vmem:[#allocation8 + $0x28] sm:$0xff]
    %v174 = vld [vmem:[#allocation8 + $0x30] sm:$0xff]
    %v175 = vld [vmem:[#allocation8 + $0x38] sm:$0xff]
    %v176 = vld [vmem:[#allocation8 + $0x40] sm:$0xff]
    %v177 = vld [vmem:[#allocation8 + $0x48] sm:$0xff]
    %v178 = vld [vmem:[#allocation8 + $0x50] sm:$0xff]
    %v179 = vld [vmem:[#allocation8 + $0x58] sm:$0xff]
    %v180 = vld [vmem:[#allocation8 + $0x60] sm:$0xff]
    %v181 = vld [vmem:[#allocation8 + $0x68] sm:$0xff]
    %v182 = vld [vmem:[#allocation8 + $0x70] sm:$0xff]
    %v183 = vld [vmem:[#allocation8 + $0x78] sm:$0xff]
    %184 = vmatprep.subr.mxu0 0.0
    %185 = vmatpush1.msra.mxu0 %v183
    %186 = vmatprep.subr.mxu0 0.0
    %187 = vmatpush1.msra.mxu0 %v182
    %188 = vmatprep.subr.mxu0 0.0
    %189 = vmatpush1.msra.mxu0 %v181
    %190 = vmatprep.subr.mxu0 0.0
    %191 = vmatpush1.msra.mxu0 %v180
    %192 = vmatprep.subr.mxu0 0.0
    %193 = vmatpush1.msra.mxu0 %v179
    %194 = vmatprep.subr.mxu0 0.0
    %195 = vmatpush1.msra.mxu0 %v178
    %196 = vmatprep.subr.mxu0 0.0
    %197 = vmatpush1.msra.mxu0 %v177
    %198 = vmatprep.subr.mxu0 0.0
    %199 = vmatpush1.msra.mxu0 %v176
    %200 = vmatprep.subr.mxu0 0.0
    %201 = vmatpush1.msra.mxu0 %v175
    %202 = vmatprep.subr.mxu0 0.0
    %203 = vmatpush1.msra.mxu0 %v174
    %204 = vmatprep.subr.mxu0 0.0
    %205 = vmatpush1.msra.mxu0 %v173
    %206 = vmatprep.subr.mxu0 0.0
    %207 = vmatpush1.msra.mxu0 %v172
    %208 = vmatprep.subr.mxu0 0.0
    %209 = vmatpush1.msra.mxu0 %v171
    %210 = vmatprep.subr.mxu0 0.0
    %211 = vmatpush1.msra.mxu0 %v170
    %212 = vmatprep.subr.mxu0 0.0
    %213 = vmatpush1.msra.mxu0 %v169
    %214 = vmatprep.subr.mxu0 0.0
    %215 = vmatpush1.msra.mxu0 %v168
    %216 = vmatprep.subr.mxu0 0.0
    %217 = vmatpush2.msra.mxu0 0.0
    %218 = vmatprep.subr.mxu0 0.0
    %219 = vmatpush2.msra.mxu0 0.0
    %220 = vmatprep.subr.mxu0 0.0
    %221 = vmatpush2.msra.mxu0 0.0
    %222 = vmatprep.subr.mxu0 0.0
    %223 = vmatpush2.msra.mxu0 0.0
    %224 = vmatprep.subr.mxu0 0.0
    %225 = vmatpush2.msra.mxu0 0.0
    %226 = vmatprep.subr.mxu0 0.0
    %227 = vmatpush2.msra.mxu0 0.0
    %228 = vmatprep.subr.mxu0 0.0
    %229 = vmatpush2.msra.mxu0 0.0
    %230 = vmatprep.subr.mxu0 0.0
    %231 = vmatpush2.msra.mxu0 0.0
    %232 = vmatprep.subr.mxu0 0.0
    %233 = vmatpush2.msra.mxu0 0.0
    %234 = vmatprep.subr.mxu0 0.0
    %235 = vmatpush2.msra.mxu0 0.0
    %236 = vmatprep.subr.mxu0 0.0
    %237 = vmatpush2.msra.mxu0 0.0
    %238 = vmatprep.subr.mxu0 0.0
    %239 = vmatpush2.msra.mxu0 0.0
    %240 = vmatprep.subr.mxu0 0.0
    %241 = vmatpush2.msra.mxu0 0.0
    %242 = vmatprep.subr.mxu0 0.0
    %243 = vmatpush2.msra.mxu0 0.0
    %244 = vmatprep.subr.mxu0 0.0
    %245 = vmatpush2.msra.mxu0 0.0
    %246 = vmatprep.subr.mxu0 0.0
    %247 = vmatpush2.msra.mxu0 0.0
    %248 = vmatprep.mubr.f32.mxu0 0.0
    %249 = vmatmul.mubr.f32.gmra.mxu0 %v164
    %v250 = vpop.f32.mrf.mxu0
    %v251 = vadd.f32 0.0, %v250
    %v252 = vpop.f32.mrf.mxu0
    %253 = vmatprep.mubr.f32.mxu0 0.0
    %254 = vmatmul.mubr.f32.gmra.mxu0 %v165
    %v255 = vpop.f32.mrf.mxu0
    %v256 = vadd.f32 0.0, %v255
    %v257 = vpop.f32.mrf.mxu0
    %258 = vdwg.mxu0
    %v259 = vadd.f32 %v166, %v251
    %v260 = vadd.f32 %v167, %v256
    %261 = vst [vmem:[#allocation2] sm:$0xff] %v259
    %262 = vst [vmem:[#allocation2 + $0x8] sm:$0xff] %v260
    %v263 = vld [vmem:[#allocation2] sm:$0xff]
    %v264 = vld [vmem:[#allocation2 + $0x8] sm:$0xff]
    %v265 = vld [vmem:[%s4] sm:$0x1]
    %v267 = vlaneseq
    %v268 = vshrl.u32 %v267, 7
    %v269 = vsub.s32 0, %v268
    %v270 = vrot.slane %v265, %v269
    %v272 = vadd.f32 %v263, %v270
    %v273 = vadd.f32 %v264, %v270
    %274 = vst [vmem:[#allocation9] sm:$0xff] %v272
    %275 = vst [vmem:[#allocation9 + $0x8] sm:$0xff] %v273
    // Predicated region
    $region34: #{tpu_custom_call.1} parent=1 // pred_check
      _
    $region35: #{tpu_custom_call.1} parent=1 // pred_check_branch
      %277 = sbr.rel (0) target = $region37
    $region36: #{tpu_custom_call.1} parent=1 // pred_region
      %s279 = ssub.s32 256, 256
      %280 = vsyncadd [#allocation5], %s279
      %s281 = sshll.u32 [#allocation9], 4
      %s282 = int_to_ptr.vmem [resolvable:$true] %s281
      %287 = dma.vmem_to_hbm [thread:$0]  %s282, 256, %s5, [#allocation5], 128, 128, 8
    $region37: #{tpu_custom_call.1} parent=1 // pred_fallthru
      _
    // Predicated region
    $region38: #{tpu_custom_call.1} parent=1 // pred_check
      _
    $region39: #{tpu_custom_call.1} parent=1 // pred_check_branch
      %289 = sbr.rel (0) target = $region41
    $region40: #{tpu_custom_call.1} parent=1 // pred_region
      %290 = dma.done [#allocation5], 256
    $region41: #{tpu_custom_call.1} parent=1 // pred_fallthru
      _
    %291 = vsyncpa [#allocation4], 1
    %292 = vsyncpa [#allocation7], 1
    %293 = vsyncpa [#allocation5], 1

</llo_original>
